<compile_context>
chip_gen: v5e
topology: v5e:2x2
jax: 0.10.0
libtpu: 0.0.40
codegen_flags: <defaults>
</compile_context>

<pallas_src>
import jax
import jax.numpy as jnp
from jax.experimental import pallas as pl
from jax.experimental.pallas import tpu as pltpu


def mm_kernel(ab_ref, o_ref):
    # ab_ref: (2, M, K) stacked [x1[0]; x2[0]] in VMEM; o_ref: (1, M, N) in VMEM.
    a = ab_ref[0].astype(jnp.float32)  # (M, K)
    b = ab_ref[1].astype(jnp.float32)  # (K, N)
    k_dim = a.shape[1]
    # VPU-only contraction: out[m, n] = sum_k a[m, k] * b[k, n].
    # K is tiny (2), so unroll statically; (M,1)x(1,N) broadcasts are cheap
    # lane/sublane broadcasts — no MXU drive, no cross-lane reduce.
    acc = a[:, 0:1] * b[0:1, :]
    for k in range(1, k_dim):
        acc = acc + a[:, k:k + 1] * b[k:k + 1, :]
    o_ref[0] = acc.astype(o_ref.dtype)  # mirrors `out[0] = torch.mm(x1, x2)`


@jax.jit
def model_forward(x1, x2):
    """x1: (1, M, K), x2: (1, K, N) -> (1, M, N) float32 (torch.Tensor default dtype)."""
    b1, M, K = x1.shape
    b2, K2, N = x2.shape
    assert b1 == 1 and b2 == 1 and K == K2, "expected (1, M, K) x (1, K, N)"
    # Stack both operands into ONE array so the call issues a single input DMA.
    # Leading-axis concat of (1, 2, 2) arrays is layout-free; requires the two
    # matrices to share a shape (M == K == N == 2 for this model).
    ab = jnp.concatenate([x1, x2], axis=0)  # (2, M, K)

    return pl.pallas_call(
        mm_kernel,
        out_shape=jax.ShapeDtypeStruct((1, M, N), jnp.float32),
        # Whole arrays in VMEM, no grid, no blocking: cheapest codegen for a
        # single-tile problem (full-array blocks are exempt from the (8, 128)
        # divisibility rule; footprint is a few KiB on every TPU generation).
        in_specs=[pl.BlockSpec(memory_space=pltpu.MemorySpace.VMEM)],
        out_specs=pl.BlockSpec(memory_space=pltpu.MemorySpace.VMEM),
        # Tell XLA's scheduler this custom call is trivially small.
        cost_estimate=pl.CostEstimate(
            flops=2 * M * N * K,
            transcendentals=0,
            bytes_accessed=4 * (M * K + K * N + M * N),
        ),
    )(ab)


if __name__ == "__main__":
    key = jax.random.PRNGKey(0)
    k1, k2 = jax.random.split(key)
    # Shapes consistent with the module's test inputs: (1, 2, 2).
    x1 = jax.random.normal(k1, (1, 2, 2), dtype=jnp.float32)
    x2 = jax.random.normal(k2, (1, 2, 2), dtype=jnp.float32)

    out = model_forward(x1, x2)
    jax.block_until_ready(out)

    # Sanity check against plain JAX matmul.
    ref = (x1[0] @ x2[0])[None]
    assert out.shape == (1, 2, 2), out.shape
    assert out.dtype == jnp.float32, out.dtype
    assert jnp.allclose(out, ref, atol=1e-5, rtol=1e-5)

    print("KERNEL_OK")
</pallas_src>

<mosaic_0001>
module attributes {stable_mosaic.version = 11 : i64} {
  func.func @mm_kernel(%arg0: memref<2x2x2xf32, #tpu.memory_space<vmem>>, %arg1: memref<1x2x2xf32, #tpu.memory_space<vmem>>) attributes {dimension_semantics = [], scalar_prefetch = 0 : i64, scratch_operands = 0 : i64, tpu.core_type = #tpu.core_type<tc>} {
    %c0 = arith.constant 0 : index
    %c0_0 = arith.constant 0 : index
    %c0_1 = arith.constant 0 : index
    %0 = vector.load %arg0[%c0, %c0_0, %c0_1] : memref<2x2x2xf32, #tpu.memory_space<vmem>>, vector<1x2x2xf32>
    %1 = vector.shape_cast %0 : vector<1x2x2xf32> to vector<2x2xf32>
    %c1 = arith.constant 1 : index
    %c0_2 = arith.constant 0 : index
    %c0_3 = arith.constant 0 : index
    %2 = vector.load %arg0[%c1, %c0_2, %c0_3] : memref<2x2x2xf32, #tpu.memory_space<vmem>>, vector<1x2x2xf32>
    %3 = vector.shape_cast %2 : vector<1x2x2xf32> to vector<2x2xf32>
    %4 = vector.extract_strided_slice %1 {offsets = [0, 0], sizes = [2, 1], strides = [1, 1]} : vector<2x2xf32> to vector<2x1xf32>
    %5 = vector.extract_strided_slice %3 {offsets = [0, 0], sizes = [1, 2], strides = [1, 1]} : vector<2x2xf32> to vector<1x2xf32>
    %6 = vector.broadcast %4 : vector<2x1xf32> to vector<2x2xf32>
    %7 = vector.broadcast %5 : vector<1x2xf32> to vector<2x2xf32>
    %8 = arith.mulf %6, %7 : vector<2x2xf32>
    %9 = vector.extract_strided_slice %1 {offsets = [0, 1], sizes = [2, 1], strides = [1, 1]} : vector<2x2xf32> to vector<2x1xf32>
    %10 = vector.extract_strided_slice %3 {offsets = [1, 0], sizes = [1, 2], strides = [1, 1]} : vector<2x2xf32> to vector<1x2xf32>
    %11 = vector.broadcast %9 : vector<2x1xf32> to vector<2x2xf32>
    %12 = vector.broadcast %10 : vector<1x2xf32> to vector<2x2xf32>
    %13 = arith.mulf %11, %12 : vector<2x2xf32>
    %14 = arith.addf %8, %13 : vector<2x2xf32>
    %c0_4 = arith.constant 0 : index
    %c0_5 = arith.constant 0 : index
    %c0_6 = arith.constant 0 : index
    %15 = vector.load %arg1[%c0_4, %c0_5, %c0_6] : memref<1x2x2xf32, #tpu.memory_space<vmem>>, vector<1x2x2xf32>
    %16 = vector.shape_cast %15 : vector<1x2x2xf32> to vector<2x2xf32>
    %17 = vector.shape_cast %14 : vector<2x2xf32> to vector<1x2x2xf32>
    tpu.vector_store %arg1[%c0_4, %c0_5, %c0_6], %17 {strides = array<i32>} : memref<1x2x2xf32, #tpu.memory_space<vmem>>, vector<1x2x2xf32>,
    return
  }
}

</mosaic_0001>

<llo_original>
// kernel: model_forward.1
$region0: #{model_forward.1}
  #allocation0 [shape = 'u32[]', space=smem, size = 0x4, offset = 0x4, fixed_abs, tag = 'smem constant byte address 0x4 - core index']
  #allocation1 [shape = 'u32[72,128]{1,0:T(1,128)}', space=vmem, size = 0x9000, scoped, tag = 'internal scratch']
  %s0 = inlined_call_operand.vmem [shape: f32[2,2,2], index: 0, kind: input, shape index: {}]
  %s1 = inlined_call_operand.hbm [shape: f32[1,2,2], index: 1, kind: output, shape index: {}]
  %s2 = sld [smem:[#allocation0]]
  $region14: #{model_forward.1} parent=0
    _
  %s4 = ssub.s32 1, %s2
  %s5 = scalar_select 0, %s4, %s2
  $region1: #{model_forward.1} parent=0
    #allocation2 [shape = 'u8[1024]{0}', space=vmem, size = 0x400, scoped, tag = 'output window, operand 0, single buffered']
    #allocation3 [shape = 's32[1]{0}', space=sflag, size = 0x4, scoped, tag = 'scoped memory for model_forward.1']
    %6 = vsyncpa [#allocation3], 0
    // Predicated region
    $region2: #{model_forward.1} parent=1 // pred_check
      _
    $region3: #{model_forward.1} parent=1 // pred_check_branch
      %8 = sbr.rel (0) target = $region5
    $region4: #{model_forward.1} parent=1 // pred_region
      _
    $region5: #{model_forward.1} parent=1 // pred_fallthru
      _
    %v9 = vld [vmem:[%s0] sm:$0x3]
    %s10 = scalar_lea.vmem %s0, 2
    %v11 = vld [vmem:[%s10] sm:$0x3]
    %13 = vset.pattern.permute.xlu0 0
    %14 = vperm.xlu0 %13, %v9
    %v15 = vpop.permute.xlu0 %14
    %v17 = vperm.slane %v11, 0
    %v18 = vmul.f32 %v15, %v17
    %19 = vset.pattern.permute.xlu0 1
    %20 = vperm.xlu0 %19, %v9
    %v21 = vpop.permute.xlu0 %20
    %v23 = vperm.slane %v11, 1
    %v24 = vmul.f32 %v21, %v23
    %v25 = vadd.f32 %v18, %v24
    %vm26 = vcmask 9216
    %27 = vst.msk [vmem:[#allocation2] sm:$0x3] %vm26, %v25
    // Predicated region
    $region6: #{model_forward.1} parent=1 // pred_check
      _
    $region7: #{model_forward.1} parent=1 // pred_check_branch
      %29 = sbr.rel (0) target = $region9
    $region8: #{model_forward.1} parent=1 // pred_region
      %31 = vsyncadd [#allocation3], 0
      %s33 = sshll.u32 [#allocation2], 4
      %s34 = int_to_ptr.vmem [resolvable:$true] %s33
      %s35 = sshll.u32 %s1, 4
      %s36 = int_to_ptr.hbm [resolvable:$true] %s35
      %38 = dma.vmem_to_hbm [thread:$0]  %s34, 32, %s36, [#allocation3]
    $region9: #{model_forward.1} parent=1 // pred_fallthru
      _
    // Predicated region
    $region10: #{model_forward.1} parent=1 // pred_check
      _
    $region11: #{model_forward.1} parent=1 // pred_check_branch
      %40 = sbr.rel (0) target = $region13
    $region12: #{model_forward.1} parent=1 // pred_region
      %42 = dma.done [#allocation3], 32
    $region13: #{model_forward.1} parent=1 // pred_fallthru
      _
    %43 = vsyncpa [#allocation3], 1

</llo_original>
